<compile_context>
chip_gen: v7x
topology: tpu7x:2x2x1
jax: 0.10.0
libtpu: 0.0.40
codegen_flags: <defaults>
</compile_context>

<pallas_src>
import functools

import jax
import jax.numpy as jnp
from jax.experimental import pallas as pl
from jax.experimental.pallas import tpu as pltpu


def _round_up(x: int, mult: int) -> int:
    return ((x + mult - 1) // mult) * mult


def _cdiv(a: int, b: int) -> int:
    return (a + b - 1) // b


@functools.lru_cache(maxsize=1)
def _tpu_config():
    """Returns (lane_mult, vmem_limit_bytes) for the current TPU generation."""
    lane_mult = 256                       # v6e/v7x: 256-deep MXU
    vmem_cap = 128 * 1024 * 1024          # v5e/v6e physical VMEM
    try:
        kind = jax.devices()[0].device_kind.lower()
        if "v5" in kind:
            lane_mult = 128               # v5e: 4x128x128 MXU
        if "v7" in kind:
            vmem_cap = 64 * 1024 * 1024   # v7x: 64 MiB per TC
    except Exception:
        pass
    try:
        vmem_cap = int(pltpu.get_tpu_info().vmem_capacity_bytes)
    except Exception:
        pass
    return lane_mult, int(vmem_cap * 3 // 4)


def _proj_kernel(x_ref, w_ref, b_ref, o_ref):
    # x_ref: (tm, d_in_p) bf16, w_ref: (d_in_p, tn) bf16, b_ref: (1, tn) f32
    acc = jnp.dot(x_ref[...], w_ref[...], preferred_element_type=jnp.float32)
    o_ref[...] = (acc + b_ref[...]).astype(o_ref.dtype)


def prepare_projector_params(w1, b1, w2, b2):
    """One-time (hoisted) fuse + pad + cast of the frozen projector weights.

    w1: (input_size, output_size)  (already transposed vs torch's (out, in))
    b1: (output_size,)
    w2: (output_size, output_size)
    b2: (output_size,)
    Returns (w_eff_padded_bf16, b_eff_padded_f32, output_size).
    """
    lane_mult, _ = _tpu_config()
    w1f = w1.astype(jnp.float32)
    w2f = w2.astype(jnp.float32)
    w_eff = w1f @ w2f                                           # (d_in, d_out)
    b_eff = b1.astype(jnp.float32) @ w2f + b2.astype(jnp.float32)
    d_in, d_out = w_eff.shape
    d_in_p = _round_up(d_in, lane_mult)
    d_out_p = _round_up(d_out, lane_mult)
    w_p = jnp.pad(w_eff, ((0, d_in_p - d_in),
                          (0, d_out_p - d_out))).astype(jnp.bfloat16)
    b_p = jnp.pad(b_eff, (0, d_out_p - d_out)).reshape(1, d_out_p)  # f32
    return w_p, b_p, d_out


@functools.partial(jax.jit, static_argnames=("d_out", "tm", "out_dtype"))
def bold_projector_forward(x, w_eff, b_eff, *, d_out, tm=512, out_dtype=None):
    """x: (batch, seq, input_size) last hidden state of the (frozen) encoder.

    w_eff / b_eff: pre-fused, pre-padded weights from prepare_projector_params.
    Returns (batch, seq, d_out) in out_dtype (defaults to x.dtype).
    """
    batch, seq, d_in = x.shape
    d_in_p, d_out_p = w_eff.shape
    out_dtype = x.dtype if out_dtype is None else out_dtype
    out_itemsize = jnp.dtype(out_dtype).itemsize
    lane_mult, vmem_limit = _tpu_config()
    m = batch * seq

    # --- Row tile: large by default, sublane-aligned (16 for bf16), shrunk
    # for tiny M so toy inputs aren't padded up to 512 rows. -----------------
    sub = 16
    tm_eff = _round_up(min(tm, _round_up(m, sub)), sub)

    # --- VMEM-budgeted column tile over the fused weight's output dim. ------
    budget = int(vmem_limit * 0.8)        # headroom for compiler scratch

    def vmem_bytes(tm_, tn_, w_bufs):
        return (2 * tm_ * d_in_p * 2                  # x tiles (bf16, 2 bufs)
                + 2 * tm_ * tn_ * out_itemsize        # out tiles (2 bufs)
                + w_bufs * (d_in_p * tn_ * 2          # weight block (bf16)
                            + tn_ * 4))               # bias block (f32)

    tn = d_out_p
    while tn > lane_mult and vmem_bytes(tm_eff, tn, 1) > budget:
        tn = _round_up(tn // 2, lane_mult)
    grid_n = _cdiv(d_out_p, tn)
    w_bufs = 1 if grid_n == 1 else 2      # single-buffer grid-invariant blocks
    while tm_eff > sub and vmem_bytes(tm_eff, tn, w_bufs) > budget:
        tm_eff = _round_up(tm_eff // 2, sub)

    # --- v7x has 2 TensorCores: prefer an even number of row tiles. ---------
    grid_m = _cdiv(m, tm_eff)
    if grid_m > 1 and grid_m % 2 == 1:
        tm_try = _round_up(_cdiv(m, grid_m + 1), sub)
        if _cdiv(m, tm_try) % 2 == 0:
            tm_eff = tm_try
        grid_m = _cdiv(m, tm_eff)
        if grid_m % 2 == 1:
            grid_m += 1                   # one zero tile; keeps both TCs busy
    m_p = grid_m * tm_eff

    # Per-call input padding (rows + lanes); zero padding is exact for matmul.
    x2 = jnp.pad(x.reshape(m, d_in).astype(jnp.bfloat16),
                 ((0, m_p - m), (0, d_in_p - d_in)))

    # Rare case (huge d_out only): column tile does not divide d_out_p.
    n_p = grid_n * tn
    if n_p != d_out_p:
        w_eff = jnp.pad(w_eff, ((0, 0), (0, n_p - d_out_p)))
        b_eff = jnp.pad(b_eff, ((0, 0), (0, n_p - d_out_p)))

    w_kw = {} if grid_n > 1 else dict(pipeline_mode=pl.Buffered(1))

    flops = 2 * m_p * d_in_p * n_p
    bytes_accessed = (m_p * d_in_p * 2            # x (bf16)
                      + d_in_p * n_p * 2          # fused weight (bf16)
                      + n_p * 4                   # fused bias (f32)
                      + m_p * n_p * out_itemsize) # output

    out = pl.pallas_call(
        _proj_kernel,
        out_shape=jax.ShapeDtypeStruct((m_p, n_p), out_dtype),
        grid_spec=pl.GridSpec(
            # N axis outermost so a weight block stays resident across all
            # row tiles (fetched grid_n times total, not grid_m * grid_n).
            grid=(grid_n, grid_m),
            in_specs=[
                pl.BlockSpec((tm_eff, d_in_p), lambda j, i: (i, 0)),
                pl.BlockSpec((d_in_p, tn), lambda j, i: (0, j), **w_kw),
                pl.BlockSpec((1, tn), lambda j, i: (0, j), **w_kw),
            ],
            out_specs=pl.BlockSpec((tm_eff, tn), lambda j, i: (i, j)),
        ),
        compiler_params=pltpu.CompilerParams(
            dimension_semantics=("parallel", "parallel"),
            vmem_limit_bytes=vmem_limit,
        ),
        cost_estimate=pl.CostEstimate(
            flops=flops, transcendentals=0, bytes_accessed=bytes_accessed),
    )(x2, w_eff, b_eff)

    return out[:m, :d_out].reshape(batch, seq, d_out)


def frozen_encoder_stub(x):
    """Frozen encoder placeholder: returns (list_of_hidden_states, aux)."""
    # TODO(synk): replace with the real encoder forward pass.
    return [x], None


def init_linear_params(key, d_in, d_out, dtype=jnp.float32):
    """Init matching torch.nn.Linear's U(-1/sqrt(d_in), 1/sqrt(d_in))."""
    kw, kb = jax.random.split(key)
    bound = 1.0 / jnp.sqrt(jnp.array(d_in, dtype))
    w = jax.random.uniform(kw, (d_in, d_out), dtype, -bound, bound)
    b = jax.random.uniform(kb, (d_out,), dtype, -bound, bound)
    return w, b


if __name__ == "__main__":
    key = jax.random.PRNGKey(0)
    k_x, k_l1, k_l2 = jax.random.split(key, 3)

    batch, seq = 2, 8
    input_size, output_size = 32, 32

    # raw input to the (stubbed) frozen encoder
    x_raw = jax.random.normal(k_x, (batch, seq, input_size), jnp.float32)

    # encoder forward (frozen, plain JAX glue) + take last hidden state
    hidden_states, _ = frozen_encoder_stub(x_raw)
    h_last = hidden_states[-1]  # (batch, seq, input_size)

    # projector params
    w1, b1 = init_linear_params(k_l1, input_size, output_size)
    w2, b2 = init_linear_params(k_l2, output_size, output_size)

    # One-time preparation (hoisted out of the hot path): eval-mode fusion
    # (dropout is identity at inference) + pad + bf16 cast of frozen weights.
    w_eff, b_eff, d_out = prepare_projector_params(w1, b1, w2, b2)

    out = bold_projector_forward(h_last, w_eff, b_eff, d_out=d_out)
    out = jax.block_until_ready(out)

    # sanity check against a plain-JAX f32 reference (bf16 MXU operands with
    # f32 accumulation + one bf16 rounding of the fused weight -> loosened
    # tolerance vs. the pure-f32 path)
    ref = (h_last.reshape(-1, input_size) @ w1 + b1) @ w2 + b2
    ref = ref.reshape(batch, seq, output_size)
    assert out.shape == (batch, seq, output_size)
    assert jnp.allclose(out, ref, atol=2e-2, rtol=2e-2), float(
        jnp.max(jnp.abs(out - ref)))

    print("KERNEL_OK")
</pallas_src>

<mosaic_0001>
module attributes {stable_mosaic.version = 11 : i64} {
  func.func @_proj_kernel(%arg0: i32, %arg1: i32, %arg2: memref<16x256xbf16, #tpu.memory_space<vmem>>, %arg3: memref<256x256xbf16, #tpu.memory_space<vmem>>, %arg4: memref<1x256xf32, #tpu.memory_space<vmem>>, %arg5: memref<16x256xf32, #tpu.memory_space<vmem>>) attributes {dimension_semantics = [#tpu.dimension_semantics<parallel>, #tpu.dimension_semantics<parallel>], iteration_bounds = array<i64: 1, 1>, scalar_prefetch = 0 : i64, scratch_operands = 0 : i64, tpu.core_type = #tpu.core_type<tc>, window_params = [{transform_indices = @transform_0, window_bounds = array<i64: 16, 256>}, {pipeline_mode = #tpu.pipeline_mode<synchronous>, transform_indices = @transform_1, window_bounds = array<i64: 256, 256>}, {pipeline_mode = #tpu.pipeline_mode<synchronous>, transform_indices = @transform_2, window_bounds = array<i64: 1, 256>}, {transform_indices = @transform_3, window_bounds = array<i64: 16, 256>}]} {
    %c0 = arith.constant 0 : index
    %c0_0 = arith.constant 0 : index
    %0 = vector.load %arg2[%c0, %c0_0] : memref<16x256xbf16, #tpu.memory_space<vmem>>, vector<16x256xbf16>
    %c0_1 = arith.constant 0 : index
    %c0_2 = arith.constant 0 : index
    %1 = vector.load %arg3[%c0_1, %c0_2] : memref<256x256xbf16, #tpu.memory_space<vmem>>, vector<256x256xbf16>
    %cst = arith.constant dense<0.000000e+00> : vector<16x256xf32>
    %2 = tpu.matmul %0, %1, %cst {dimension_numbers = #tpu.dot_dimension_numbers<[1], [0], [0], [1], [0, 0, 1, 1], [], []>} : vector<16x256xbf16>, vector<256x256xbf16>, vector<16x256xf32> -> vector<16x256xf32>
    %c0_3 = arith.constant 0 : index
    %c0_4 = arith.constant 0 : index
    %3 = vector.load %arg4[%c0_3, %c0_4] : memref<1x256xf32, #tpu.memory_space<vmem>>, vector<1x256xf32>
    %4 = vector.broadcast %3 : vector<1x256xf32> to vector<16x256xf32>
    %5 = arith.addf %2, %4 : vector<16x256xf32>
    %c0_5 = arith.constant 0 : index
    %c0_6 = arith.constant 0 : index
    %6 = vector.load %arg5[%c0_5, %c0_6] : memref<16x256xf32, #tpu.memory_space<vmem>>, vector<16x256xf32>
    tpu.vector_store %arg5[%c0_5, %c0_6], %5 {strides = array<i32>} : memref<16x256xf32, #tpu.memory_space<vmem>>, vector<16x256xf32>,
    return
  }
  func.func @transform_0(%arg0: i32, %arg1: i32) -> (i32, i32) {
    %c0_i32 = arith.constant 0 : i32
    %c0_i32_0 = arith.constant 0 : i32
    return %arg1, %c0_i32 : i32, i32
  }
  func.func @transform_1(%arg0: i32, %arg1: i32) -> (i32, i32) {
    %c0_i32 = arith.constant 0 : i32
    %c0_i32_0 = arith.constant 0 : i32
    return %c0_i32, %arg0 : i32, i32
  }
  func.func @transform_2(%arg0: i32, %arg1: i32) -> (i32, i32) {
    %c0_i32 = arith.constant 0 : i32
    %c0_i32_0 = arith.constant 0 : i32
    return %c0_i32, %arg0 : i32, i32
  }
  func.func @transform_3(%arg0: i32, %arg1: i32) -> (i32, i32) {
    %c0_i32 = arith.constant 0 : i32
    return %arg1, %arg0 : i32, i32
  }
}

</mosaic_0001>

<llo_original>
// kernel: bold_projector_forward.1
$region0: #{bold_projector_forward.1}
  #allocation0 [shape = 'u32[]', space=smem, size = 0x4, offset = 0x4, fixed_abs, tag = 'smem constant byte address 0x4 - core index']
  #allocation1 [shape = 'u32[144,128]{1,0:T(1,128)}', space=vmem, size = 0x12000, scoped, tag = 'internal scratch']
  %s0 = inlined_call_operand.hbm [shape: bf16[16,256], index: 0, kind: input, shape index: {}]
  %s1 = inlined_call_operand.hbm [shape: bf16[256,256], index: 1, kind: input, shape index: {}]
  %s2 = inlined_call_operand.hbm [shape: f32[1,256], index: 2, kind: input, shape index: {}]
  %s3 = inlined_call_operand.hbm [shape: f32[16,256], index: 3, kind: output, shape index: {}]
  %s4 = sld [smem:[#allocation0]]
  $region34: #{bold_projector_forward.1} parent=0
    _
  %s6 = ssub.s32 1, %s4
  %s7 = scalar_select 0, %s6, %s4
  $region1: #{bold_projector_forward.1} parent=0
    #allocation2 [shape = 'u8[8192]{0}', space=vmem, size = 0x2000, scoped, tag = 'input window, operand 0, single buffered']
    #allocation3 [shape = 's32[1]{0}', space=sflag, size = 0x4, scoped, tag = 'scoped memory for bold_projector_forward.1']
    #allocation4 [shape = 's32[1]{0}', space=sflag, size = 0x4, scoped, tag = 'scoped memory for bold_projector_forward.1']
    #allocation5 [shape = 'u8[131072]{0}', space=vmem, size = 0x20000, scoped, tag = 'input window, operand 1, single buffered']
    #allocation6 [shape = 's32[1]{0}', space=sflag, size = 0x4, scoped, tag = 'scoped memory for bold_projector_forward.1']
    #allocation7 [shape = 'u8[1024]{0}', space=vmem, size = 0x400, scoped, tag = 'input window, operand 2, single buffered']
    #allocation8 [shape = 'u8[16384]{0}', space=vmem, size = 0x4000, scoped, tag = 'output window, operand 0, single buffered']
    %8 = vsyncpa [#allocation3], 0
    %9 = vsyncpa [#allocation6], 0
    %10 = vsyncpa [#allocation4], 0
    // Predicated region
    $region2: #{bold_projector_forward.1} parent=1 // pred_check
      _
    $region3: #{bold_projector_forward.1} parent=1 // pred_check_branch
      %12 = sbr.rel (0) target = $region5
    $region4: #{bold_projector_forward.1} parent=1 // pred_region
      %s14 = ssub.s32 256, 256
      %15 = vsyncadd [#allocation3], %s14
      %s16 = sshll.u32 [#allocation2], 4
      %s17 = int_to_ptr.vmem [resolvable:$true] %s16
      %22 = dma.hbm_to_vmem [thread:$0]  %s0, 256, %s17, [#allocation3], 128, 128, 8
    $region5: #{bold_projector_forward.1} parent=1 // pred_fallthru
      _
    // Predicated region
    $region6: #{bold_projector_forward.1} parent=1 // pred_check
      _
    $region7: #{bold_projector_forward.1} parent=1 // pred_check_branch
      %24 = sbr.rel (0) target = $region9
    $region8: #{bold_projector_forward.1} parent=1 // pred_region
      %s26 = ssub.s32 4096, 4096
      %27 = vsyncadd [#allocation6], %s26
      %s28 = sshll.u32 [#allocation5], 4
      %s29 = int_to_ptr.vmem [resolvable:$true] %s28
      %34 = dma.hbm_to_vmem [thread:$0]  %s1, 4096, %s29, [#allocation6], 128, 128, 8
    $region9: #{bold_projector_forward.1} parent=1 // pred_fallthru
      _
    // Predicated region
    $region10: #{bold_projector_forward.1} parent=1 // pred_check
      _
    $region11: #{bold_projector_forward.1} parent=1 // pred_check_branch
      %36 = sbr.rel (0) target = $region13
    $region12: #{bold_projector_forward.1} parent=1 // pred_region
      %s38 = ssub.s32 32, 32
      %39 = vsyncadd [#allocation6], %s38
      %s41 = sshll.u32 [#allocation7], 4
      %s42 = int_to_ptr.vmem [resolvable:$true] %s41
      %44 = dma.hbm_to_vmem [thread:$0]  %s2, 32, %s42, [#allocation6]
    $region13: #{bold_projector_forward.1} parent=1 // pred_fallthru
      _
    // Predicated region
    $region14: #{bold_projector_forward.1} parent=1 // pred_check
      _
    $region15: #{bold_projector_forward.1} parent=1 // pred_check_branch
      %46 = sbr.rel (0) target = $region17
    $region16: #{bold_projector_forward.1} parent=1 // pred_region
      %47 = dma.done [#allocation3], 256
    $region17: #{bold_projector_forward.1} parent=1 // pred_fallthru
      _
    // Predicated region
    $region18: #{bold_projector_forward.1} parent=1 // pred_check
      _
    $region19: #{bold_projector_forward.1} parent=1 // pred_check_branch
      %49 = sbr.rel (0) target = $region21
    $region20: #{bold_projector_forward.1} parent=1 // pred_region
      %50 = dma.done [#allocation6], 4096
    $region21: #{bold_projector_forward.1} parent=1 // pred_fallthru
      _
    // Predicated region
    $region22: #{bold_projector_forward.1} parent=1 // pred_check
      _
    $region23: #{bold_projector_forward.1} parent=1 // pred_check_branch
      %52 = sbr.rel (0) target = $region25
    $region24: #{bold_projector_forward.1} parent=1 // pred_region
      %53 = dma.done [#allocation6], 32
    $region25: #{bold_projector_forward.1} parent=1 // pred_fallthru
      _
    %v54 = vld [vmem:[#allocation2] sm:$0xff]
    %v55 = vld [vmem:[#allocation2 + $0x8] sm:$0xff]
    %v56 = vld [vmem:[#allocation5] sm:$0xff]
    %v57 = vld [vmem:[#allocation5 + $0x8] sm:$0xff]
    %v58 = vld [vmem:[#allocation5 + $0x10] sm:$0xff]
    %v59 = vld [vmem:[#allocation5 + $0x18] sm:$0xff]
    %v60 = vld [vmem:[#allocation5 + $0x20] sm:$0xff]
    %v61 = vld [vmem:[#allocation5 + $0x28] sm:$0xff]
    %v62 = vld [vmem:[#allocation5 + $0x30] sm:$0xff]
    %v63 = vld [vmem:[#allocation5 + $0x38] sm:$0xff]
    %v64 = vld [vmem:[#allocation5 + $0x40] sm:$0xff]
    %v65 = vld [vmem:[#allocation5 + $0x48] sm:$0xff]
    %v66 = vld [vmem:[#allocation5 + $0x50] sm:$0xff]
    %v67 = vld [vmem:[#allocation5 + $0x58] sm:$0xff]
    %v68 = vld [vmem:[#allocation5 + $0x60] sm:$0xff]
    %v69 = vld [vmem:[#allocation5 + $0x68] sm:$0xff]
    %v70 = vld [vmem:[#allocation5 + $0x70] sm:$0xff]
    %v71 = vld [vmem:[#allocation5 + $0x78] sm:$0xff]
    %v72 = vld [vmem:[#allocation5 + $0x80] sm:$0xff]
    %v73 = vld [vmem:[#allocation5 + $0x88] sm:$0xff]
    %v74 = vld [vmem:[#allocation5 + $0x90] sm:$0xff]
    %v75 = vld [vmem:[#allocation5 + $0x98] sm:$0xff]
    %v76 = vld [vmem:[#allocation5 + $0xa0] sm:$0xff]
    %v77 = vld [vmem:[#allocation5 + $0xa8] sm:$0xff]
    %v78 = vld [vmem:[#allocation5 + $0xb0] sm:$0xff]
    %v79 = vld [vmem:[#allocation5 + $0xb8] sm:$0xff]
    %v80 = vld [vmem:[#allocation5 + $0xc0] sm:$0xff]
    %v81 = vld [vmem:[#allocation5 + $0xc8] sm:$0xff]
    %v82 = vld [vmem:[#allocation5 + $0xd0] sm:$0xff]
    %v83 = vld [vmem:[#allocation5 + $0xd8] sm:$0xff]
    %v84 = vld [vmem:[#allocation5 + $0xe0] sm:$0xff]
    %v85 = vld [vmem:[#allocation5 + $0xe8] sm:$0xff]
    %v86 = vld [vmem:[#allocation5 + $0xf0] sm:$0xff]
    %v87 = vld [vmem:[#allocation5 + $0xf8] sm:$0xff]
    %v88 = vld [vmem:[#allocation7] sm:$0x3]
    %v90 = vlaneseq
    %v91 = vshrl.u32 %v90, 7
    %v92 = vsub.s32 0, %v91
    %v93 = vrot.slane %v88, %v92
    %v94 = vlaneseq
    %v95 = vshrl.u32 %v94, 7
    %v96 = vsub.s32 1, %v95
    %v97 = vrot.slane %v88, %v96
    %v102 = vunpack.c.l.b16 %v54
    %v103 = vunpack.c.h.b16 %v54
    %v104 = vunpack.c.l.b16 %v55
    %v105 = vunpack.c.h.b16 %v55
    %v106 = vpack.c.b16 %v104, %v102
    %v107 = vpack.c.b16 %v105, %v103
    %v142 = vunpack.c.l.b16 %v56
    %v143 = vunpack.c.h.b16 %v56
    %v144 = vunpack.c.l.b16 %v57
    %v145 = vunpack.c.h.b16 %v57
    %v146 = vunpack.c.l.b16 %v58
    %v147 = vunpack.c.h.b16 %v58
    %v148 = vunpack.c.l.b16 %v59
    %v149 = vunpack.c.h.b16 %v59
    %v150 = vunpack.c.l.b16 %v60
    %v151 = vunpack.c.h.b16 %v60
    %v152 = vunpack.c.l.b16 %v61
    %v153 = vunpack.c.h.b16 %v61
    %v154 = vunpack.c.l.b16 %v62
    %v155 = vunpack.c.h.b16 %v62
    %v156 = vunpack.c.l.b16 %v63
    %v157 = vunpack.c.h.b16 %v63
    %v158 = vunpack.c.l.b16 %v64
    %v159 = vunpack.c.h.b16 %v64
    %v160 = vunpack.c.l.b16 %v65
    %v161 = vunpack.c.h.b16 %v65
    %v162 = vunpack.c.l.b16 %v66
    %v163 = vunpack.c.h.b16 %v66
    %v164 = vunpack.c.l.b16 %v67
    %v165 = vunpack.c.h.b16 %v67
    %v166 = vunpack.c.l.b16 %v68
    %v167 = vunpack.c.h.b16 %v68
    %v168 = vunpack.c.l.b16 %v69
    %v169 = vunpack.c.h.b16 %v69
    %v170 = vunpack.c.l.b16 %v70
    %v171 = vunpack.c.h.b16 %v70
    %v172 = vunpack.c.l.b16 %v71
    %v173 = vunpack.c.h.b16 %v71
    %v174 = vunpack.c.l.b16 %v72
    %v175 = vunpack.c.h.b16 %v72
    %v176 = vunpack.c.l.b16 %v73
    %v177 = vunpack.c.h.b16 %v73
    %v178 = vunpack.c.l.b16 %v74
    %v179 = vunpack.c.h.b16 %v74
    %v180 = vunpack.c.l.b16 %v75
    %v181 = vunpack.c.h.b16 %v75
    %v182 = vunpack.c.l.b16 %v76
    %v183 = vunpack.c.h.b16 %v76
    %v184 = vunpack.c.l.b16 %v77
    %v185 = vunpack.c.h.b16 %v77
    %v186 = vunpack.c.l.b16 %v78
    %v187 = vunpack.c.h.b16 %v78
    %v188 = vunpack.c.l.b16 %v79
    %v189 = vunpack.c.h.b16 %v79
    %v190 = vunpack.c.l.b16 %v80
    %v191 = vunpack.c.h.b16 %v80
    %v192 = vunpack.c.l.b16 %v81
    %v193 = vunpack.c.h.b16 %v81
    %v194 = vunpack.c.l.b16 %v82
    %v195 = vunpack.c.h.b16 %v82
    %v196 = vunpack.c.l.b16 %v83
    %v197 = vunpack.c.h.b16 %v83
    %v198 = vunpack.c.l.b16 %v84
    %v199 = vunpack.c.h.b16 %v84
    %v200 = vunpack.c.l.b16 %v85
    %v201 = vunpack.c.h.b16 %v85
    %v202 = vunpack.c.l.b16 %v86
    %v203 = vunpack.c.h.b16 %v86
    %v204 = vunpack.c.l.b16 %v87
    %v205 = vunpack.c.h.b16 %v87
    %v206 = vpack.c.b16 %v144, %v142
    %v207 = vpack.c.b16 %v145, %v143
    %v208 = vpack.c.b16 %v148, %v146
    %v209 = vpack.c.b16 %v149, %v147
    %v210 = vpack.c.b16 %v152, %v150
    %v211 = vpack.c.b16 %v153, %v151
    %v212 = vpack.c.b16 %v156, %v154
    %v213 = vpack.c.b16 %v157, %v155
    %v214 = vpack.c.b16 %v160, %v158
    %v215 = vpack.c.b16 %v161, %v159
    %v216 = vpack.c.b16 %v164, %v162
    %v217 = vpack.c.b16 %v165, %v163
    %v218 = vpack.c.b16 %v168, %v166
    %v219 = vpack.c.b16 %v169, %v167
    %v220 = vpack.c.b16 %v172, %v170
    %v221 = vpack.c.b16 %v173, %v171
    %v222 = vpack.c.b16 %v176, %v174
    %v223 = vpack.c.b16 %v177, %v175
    %v224 = vpack.c.b16 %v180, %v178
    %v225 = vpack.c.b16 %v181, %v179
    %v226 = vpack.c.b16 %v184, %v182
    %v227 = vpack.c.b16 %v185, %v183
    %v228 = vpack.c.b16 %v188, %v186
    %v229 = vpack.c.b16 %v189, %v187
    %v230 = vpack.c.b16 %v192, %v190
    %v231 = vpack.c.b16 %v193, %v191
    %v232 = vpack.c.b16 %v196, %v194
    %v233 = vpack.c.b16 %v197, %v195
    %v234 = vpack.c.b16 %v200, %v198
    %v235 = vpack.c.b16 %v201, %v199
    %v236 = vpack.c.b16 %v204, %v202
    %v237 = vpack.c.b16 %v205, %v203
    %270 = vmatprep.subr.bf16.mxu0 %v207
    %271 = vmatpush1.bf16.msra.mxu0 %v206
    %272 = vmatprep.subr.bf16.mxu0 %v209
    %273 = vmatpush1.bf16.msra.mxu0 %v208
    %274 = vmatprep.subr.bf16.mxu0 %v211
    %275 = vmatpush1.bf16.msra.mxu0 %v210
    %276 = vmatprep.subr.bf16.mxu0 %v213
    %277 = vmatpush1.bf16.msra.mxu0 %v212
    %278 = vmatprep.subr.bf16.mxu0 %v215
    %279 = vmatpush1.bf16.msra.mxu0 %v214
    %280 = vmatprep.subr.bf16.mxu0 %v217
    %281 = vmatpush1.bf16.msra.mxu0 %v216
    %282 = vmatprep.subr.bf16.mxu0 %v219
    %283 = vmatpush1.bf16.msra.mxu0 %v218
    %284 = vmatprep.subr.bf16.mxu0 %v221
    %285 = vmatpush1.bf16.msra.mxu0 %v220
    %286 = vmatprep.subr.bf16.mxu0 %v223
    %287 = vmatpush1.bf16.msra.mxu0 %v222
    %288 = vmatprep.subr.bf16.mxu0 %v225
    %289 = vmatpush1.bf16.msra.mxu0 %v224
    %290 = vmatprep.subr.bf16.mxu0 %v227
    %291 = vmatpush1.bf16.msra.mxu0 %v226
    %292 = vmatprep.subr.bf16.mxu0 %v229
    %293 = vmatpush1.bf16.msra.mxu0 %v228
    %294 = vmatprep.subr.bf16.mxu0 %v231
    %295 = vmatpush1.bf16.msra.mxu0 %v230
    %296 = vmatprep.subr.bf16.mxu0 %v233
    %297 = vmatpush1.bf16.msra.mxu0 %v232
    %298 = vmatprep.subr.bf16.mxu0 %v235
    %299 = vmatpush1.bf16.msra.mxu0 %v234
    %300 = vmatprep.subr.bf16.mxu0 %v237
    %301 = vmatpush1.bf16.msra.mxu0 %v236
    %302 = vmatprep.mubr.bf16.mxu0 %v107
    %303 = vmatmul.mubr.bf16.gmra.mrb[0].mxu0 %v106
    %v304 = vpop.f32.mrb[0].mxu0
    %v305 = vadd.f32 %v93, %v304
    %v306 = vpop.f32.mrb[0].mxu0
    %v307 = vadd.f32 %v97, %v306
    %v308 = vpop.f32.mrb[0].mxu0
    %v309 = vadd.f32 %v93, %v308
    %v310 = vpop.f32.mrb[0].mxu0
    %v311 = vadd.f32 %v97, %v310
    %312 = vdwg.mxu0
    %313 = vst [vmem:[#allocation8] sm:$0xff] %v305
    %314 = vst [vmem:[#allocation8 + $0x8] sm:$0xff] %v307
    %315 = vst [vmem:[#allocation8 + $0x10] sm:$0xff] %v309
    %316 = vst [vmem:[#allocation8 + $0x18] sm:$0xff] %v311
    // Predicated region
    $region26: #{bold_projector_forward.1} parent=1 // pred_check
      _
    $region27: #{bold_projector_forward.1} parent=1 // pred_check_branch
      %318 = sbr.rel (0) target = $region29
    $region28: #{bold_projector_forward.1} parent=1 // pred_region
      %s320 = ssub.s32 512, 512
      %321 = vsyncadd [#allocation4], %s320
      %s322 = sshll.u32 [#allocation8], 4
      %s323 = int_to_ptr.vmem [resolvable:$true] %s322
      %328 = dma.vmem_to_hbm [thread:$0]  %s323, 512, %s3, [#allocation4], 256, 256, 16
    $region29: #{bold_projector_forward.1} parent=1 // pred_fallthru
      _
    // Predicated region
    $region30: #{bold_projector_forward.1} parent=1 // pred_check
      _
    $region31: #{bold_projector_forward.1} parent=1 // pred_check_branch
      %330 = sbr.rel (0) target = $region33
    $region32: #{bold_projector_forward.1} parent=1 // pred_region
      %331 = dma.done [#allocation4], 512
    $region33: #{bold_projector_forward.1} parent=1 // pred_fallthru
      _
    %332 = vsyncpa [#allocation3], 1
    %333 = vsyncpa [#allocation6], 1
    %334 = vsyncpa [#allocation4], 1

</llo_original>
